<compile_context>
chip_gen: v7x
topology: tpu7x:2x2x1
jax: 0.10.0
libtpu: 0.0.40
codegen_flags: <defaults>
</compile_context>

<pallas_src>
import functools

import jax
import jax.numpy as jnp
import numpy as np
from jax.experimental import pallas as pl
from jax.experimental.pallas import tpu as pltpu

LRELU_SLOPE = 0.1

_TT_MAX = 512            # time-tile width (multiple of 128). TODO(synk): sweep 1024-2048 on v5e/v6e (128 MiB VMEM).
_HALO = 128              # lane-aligned halo block (covers Kq-1 < 128 taps)
_COG_CAP = 256           # output-channel tile cap (per review: ~256 for v7x)
_CIN_CAP = 256           # input-channel chunk cap (bounds patch scratch / CK tile)
_VMEM_LIMIT = 48 * 1024 * 1024   # < 64 MiB so v7x keeps headroom; fine on v5e/v6e


def _round_up(a, m):
    return (a + m - 1) // m * m


def _split_padded(c, cap):
    """Split c channels into n tiles of equal size (multiple of 8), padding c up.

    Returns (n_tiles, tile, padded) with n_tiles * tile == padded >= c."""
    n = -(-c // cap)
    tile = _round_up(-(-c // n), 8)
    return n, tile, n * tile


def _split_exact(c, cap):
    """Split c (multiple of 8) into n equal tiles (multiple of 8) without padding.

    Falls back to a single tile if no divisor works (correct, just more VMEM)."""
    if c <= cap:
        return 1, c
    n = -(-c // cap)
    while n * 8 <= c:
        if c % n == 0 and (c // n) % 8 == 0:
            return n, c // n
        n += 1
    return 1, c


# ---------------------------------------------------------------------------
# Main kernel: grouped / strided Conv1d + bias + optional leaky-relu.
# ---------------------------------------------------------------------------
def _conv1d_group_kernel(x_ref, xh_ref, w_ref, b_ref, o_ref,
                         stage_ref, patch_ref, acc_ref, *,
                         s, kq, cin_t, n_ci, slope, apply_act):
    # x_ref:     (1, S, cin_t, TT)          bf16 input chunk, time tile ji
    # xh_ref:    (1, S, cin_t, 128)         bf16 halo = next 128 time samples
    # w_ref:     (1, 1, 1, cog_t, ck_t)     bf16 folded weights (this co/ci tile)
    # b_ref:     (1, cog_t, 1)              f32 bias (this co tile)
    # o_ref:     (1, cog_t, TT)             bf16 output tile
    # stage_ref: (S, cin_t, TT + 128)       bf16 contiguous staging (tile + halo)
    # patch_ref: (ck_t, TT)                 bf16 im2col patch matrix
    # acc_ref:   (cog_t, TT)                f32 accumulator (used when n_ci > 1)
    tt = o_ref.shape[-1]
    co = pl.program_id(3)
    ci = pl.program_id(4)

    def build_patch():
        # Stage main tile and halo contiguously in time, so every patch row is a
        # single full-width, lane-aligned store from a lane-offset read.
        stage_ref[:, :, :tt] = x_ref[0]
        stage_ref[:, :, tt:] = xh_ref[0]
        # Row (q*S + r)*cin_t + i  holds  x_phase[r, i, q : q + TT].
        # (Rows with q*S + r >= K multiply zero-extended weights; they are still
        #  written, so no stale-VMEM NaN risk.)
        for q in range(kq):
            for r in range(s):
                row = (q * s + r) * cin_t
                patch_ref[row:row + cin_t, :] = stage_ref[r, :, q:q + tt]

    if n_ci > 1:
        build_patch()                       # patch depends on ci -> rebuild each step
    else:
        pl.when(co == 0)(build_patch)       # reuse across output-channel tiles

    contrib = jnp.dot(w_ref[0, 0, 0], patch_ref[...],
                      preferred_element_type=jnp.float32)

    def finalize(acc):
        y = acc + b_ref[0]
        if apply_act:
            y = jnp.where(y >= 0, y, slope * y)
        o_ref[0] = y.astype(o_ref.dtype)

    if n_ci == 1:
        finalize(contrib)
    else:
        @pl.when(ci == 0)
        def _():
            acc_ref[...] = jnp.zeros_like(acc_ref)

        acc_ref[...] += contrib

        @pl.when(ci == n_ci - 1)
        def _():
            finalize(acc_ref[...])


def conv1d_pallas(x, w, b, *, stride, padding, groups, apply_act,
                  slope=LRELU_SLOPE, out_dtype=jnp.bfloat16,
                  cog_cap=_COG_CAP, cin_cap=_CIN_CAP):
    """Conv1d (NCW, like torch.nn.Conv1d) + bias + optional leaky-relu."""
    B, Cin, T = x.shape
    Cout, Cin_g, K = w.shape
    assert Cin == Cin_g * groups and Cout % groups == 0
    G, S = groups, stride
    cog = Cout // groups

    x = x.astype(jnp.bfloat16)   # bf16 at the kernel boundary (f32 accumulation inside)

    # --- channel tiling (cog tiles / cin chunks) + 8-sublane padding -----------
    if G == 1:
        n_ci, cin_t, cin_gp = _split_padded(Cin, cin_cap)
        n_co, cog_t, cog_p = _split_padded(Cout, cog_cap)
        if cin_gp != Cin:
            x = jnp.pad(x, ((0, 0), (0, cin_gp - Cin), (0, 0)))
            w = jnp.pad(w, ((0, 0), (0, cin_gp - Cin), (0, 0)))
        if cog_p != Cout:
            w = jnp.pad(w, ((0, cog_p - Cout), (0, 0), (0, 0)))
            b = jnp.pad(b, ((0, cog_p - Cout),))
        cin_g = cin_gp
    else:
        assert Cin_g % 8 == 0 and cog % 8 == 0, (
            "grouped conv needs per-group channel counts that are multiples of 8")
        n_ci, cin_t = _split_exact(Cin_g, cin_cap)
        n_co, cog_t = _split_exact(cog, cog_cap)
        cin_g = Cin_g
        cog_p = n_co * cog_t            # == cog (exact split, no interleaved padding)

    Tout = (T + 2 * padding - K) // S + 1
    Kq = -(-K // S)                               # ceil(K / stride)
    TT = min(_TT_MAX, _round_up(Tout, 128))       # lane-aligned time tile
    NT = -(-Tout // TT)
    Ttot = NT * TT + _HALO                        # per-phase length incl. halo room

    # --- time pad + phase decomposition: x_ph[b, r, c, u] = xpad[b, c, u*S + r] ---
    # (pad -> reshape -> transpose happens on bf16; XLA fuses this into one pass.)
    right = S * Ttot - T - padding
    xpad = jnp.pad(x, ((0, 0), (0, 0), (padding, right)))
    cin_tot = G * cin_g
    x_ph = xpad.reshape(B, cin_tot, Ttot, S).transpose(0, 3, 1, 2)   # (B,S,Ctot,Ttot)

    # --- fold (tap, phase, cin-chunk) into per-tile contraction blocks ----------
    ck_t = Kq * S * cin_t
    w_pad = jnp.pad(w, ((0, 0), (0, 0), (0, Kq * S - K)))            # zero-extend taps
    w_ph = w_pad.reshape(G * cog_p, cin_g, Kq, S).transpose(0, 2, 3, 1)     # (O,q,r,i)
    w_ph = w_ph.reshape(G * cog_p, Kq, S, n_ci, cin_t).transpose(0, 3, 1, 2, 4)
    w_ph = w_ph.reshape(G, n_co, cog_t, n_ci, ck_t).transpose(0, 3, 1, 2, 4)
    w2 = w_ph.astype(jnp.bfloat16)                # (G, n_ci, n_co, cog_t, ck_t)
    b3 = b.reshape(G * n_co, cog_t, 1).astype(jnp.float32)

    tt_blocks = TT // _HALO
    kernel = functools.partial(_conv1d_group_kernel, s=S, kq=Kq, cin_t=cin_t,
                               n_ci=n_ci, slope=slope, apply_act=apply_act)
    out = pl.pallas_call(
        kernel,
        out_shape=jax.ShapeDtypeStruct((B, G * cog_p, NT * TT), out_dtype),
        grid=(B, G, NT, n_co, n_ci),
        in_specs=[
            # main time tile of this (group, cin-chunk)'s input channels
            pl.BlockSpec((1, S, cin_t, TT),
                         lambda bi, gi, ji, co, ci: (bi, 0, gi * n_ci + ci, ji)),
            # halo: next 128 samples (same array, narrow 128-wide blocks)
            pl.BlockSpec((1, S, cin_t, _HALO),
                         lambda bi, gi, ji, co, ci: (bi, 0, gi * n_ci + ci,
                                                     (ji + 1) * tt_blocks)),
            # folded weights / bias for this (group, co-tile, ci-chunk)
            pl.BlockSpec((1, 1, 1, cog_t, ck_t),
                         lambda bi, gi, ji, co, ci: (gi, ci, co, 0, 0)),
            pl.BlockSpec((1, cog_t, 1),
                         lambda bi, gi, ji, co, ci: (gi * n_co + co, 0, 0)),
        ],
        out_specs=pl.BlockSpec((1, cog_t, TT),
                               lambda bi, gi, ji, co, ci: (bi, gi * n_co + co, ji)),
        scratch_shapes=[
            pltpu.VMEM((S, cin_t, TT + _HALO), jnp.bfloat16),   # staging buffer
            pltpu.VMEM((ck_t, TT), jnp.bfloat16),               # im2col patch
            pltpu.VMEM((cog_t, TT), jnp.float32),               # accumulator
        ],
        compiler_params=pltpu.CompilerParams(
            dimension_semantics=("parallel", "parallel", "arbitrary",
                                 "arbitrary", "arbitrary"),
            vmem_limit_bytes=_VMEM_LIMIT),
    )(x_ph, x_ph, w2, b3)
    # Slice away channel / time padding (the slice is needed anyway: fmap must
    # carry exact torch shapes).
    return out[:, :Cout, :Tout]


# ---------------------------------------------------------------------------
# conv_post (Cout=1, K=3, stride=1): VPU per-tap channel reduction (MXU idle).
# ---------------------------------------------------------------------------
def _conv_post_kernel(x_ref, xh_ref, w_ref, b_ref, o_ref, stage_ref, *, k_taps):
    # x_ref: (1, Cin, TT) bf16    xh_ref: (1, Cin, 128) bf16
    # w_ref: (Cin, K) f32         b_ref: (1, 1) f32
    # o_ref: (1, 1, TT) f32       stage_ref: (Cin, TT+128) bf16
    tt = o_ref.shape[-1]
    stage_ref[:, :tt] = x_ref[0]
    stage_ref[:, tt:] = xh_ref[0]
    y = jnp.zeros((1, tt), jnp.float32)
    for k in range(k_taps):
        xk = stage_ref[:, k:k + tt].astype(jnp.float32)
        y = y + jnp.sum(w_ref[:, k:k + 1] * xk, axis=0, keepdims=True)
    o_ref[0] = y + b_ref[...]


def conv_post_pallas(x, w, b, *, padding):
    """Conv1d with Cout=1, stride=1, groups=1 (conv_post), f32 output."""
    B, Cin, T = x.shape
    Cout, Cin_w, K = w.shape
    assert Cout == 1 and Cin_w == Cin
    Tout = T + 2 * padding - K + 1
    TT = min(_TT_MAX, _round_up(Tout, 128))
    NT = -(-Tout // TT)
    Ttot = NT * TT + _HALO
    x = x.astype(jnp.bfloat16)
    xpad = jnp.pad(x, ((0, 0), (0, 0), (padding, Ttot - T - padding)))
    w2 = w[0].astype(jnp.float32)                 # (Cin, K)
    b2 = b.reshape(1, 1).astype(jnp.float32)

    tt_blocks = TT // _HALO
    kernel = functools.partial(_conv_post_kernel, k_taps=K)
    out = pl.pallas_call(
        kernel,
        out_shape=jax.ShapeDtypeStruct((B, 1, NT * TT), jnp.float32),
        grid=(B, NT),
        in_specs=[
            pl.BlockSpec((1, Cin, TT), lambda bi, ji: (bi, 0, ji)),
            pl.BlockSpec((1, Cin, _HALO),
                         lambda bi, ji: (bi, 0, (ji + 1) * tt_blocks)),
            pl.BlockSpec((Cin, K), lambda bi, ji: (0, 0)),
            pl.BlockSpec((1, 1), lambda bi, ji: (0, 0)),
        ],
        out_specs=pl.BlockSpec((1, 1, TT), lambda bi, ji: (bi, 0, ji)),
        scratch_shapes=[pltpu.VMEM((Cin, TT + _HALO), jnp.bfloat16)],
        compiler_params=pltpu.CompilerParams(
            dimension_semantics=("parallel", "arbitrary"),
            vmem_limit_bytes=_VMEM_LIMIT),
    )(xpad, xpad, w2, b2)
    return out[:, :, :Tout]


# ---------------------------------------------------------------------------
# Forward pass mirroring DiscriminatorSpec.forward
# ---------------------------------------------------------------------------
def discriminator_spec_forward(params, x, *, cog_cap=_COG_CAP, cin_cap=_CIN_CAP):
    """convs + leaky_relu (fmap), conv_post (fmap), flatten."""
    fmap = []
    h = x
    for p in params["convs"]:
        h = conv1d_pallas(h, p["w"], p["b"], stride=p["stride"], padding=p["pad"],
                          groups=p["groups"], apply_act=True,
                          cog_cap=cog_cap, cin_cap=cin_cap)
        fmap.append(h)                      # bf16 activations (f32-accumulated)
    p = params["conv_post"]
    h = conv_post_pallas(h, p["w"], p["b"], padding=p["pad"])
    fmap.append(h)
    out = h.reshape(h.shape[0], -1)         # torch.flatten(x, 1, -1)
    return out, fmap


def _init_weight_norm_conv(key, cout, cin_g, k):
    """Deterministic synthetic params; weight_norm(dim=0): w = g * v / ||v||."""
    kv, kg, kb = jax.random.split(key, 3)
    v = 0.1 * jax.random.normal(kv, (cout, cin_g, k), jnp.float32)
    g = jax.random.uniform(kg, (cout, 1, 1), jnp.float32, minval=0.5, maxval=1.5)
    bias = 0.1 * jax.random.normal(kb, (cout,), jnp.float32)
    norm = jnp.sqrt(jnp.sum(v * v, axis=(1, 2), keepdims=True))
    w = g * v / norm
    return w, bias


def _ref_forward(params, x):
    """Pure-JAX reference matching the kernel's precision policy:
    bf16 inputs/weights, f32 accumulation, bf16 activation storage; conv_post
    uses f32 weights on the bf16-quantized last activation."""
    def conv(h, w, bias, stride, pad, groups):
        y = jax.lax.conv_general_dilated(
            h, w, window_strides=(stride,), padding=[(pad, pad)],
            dimension_numbers=("NCH", "OIH", "NCH"),
            feature_group_count=groups, precision=jax.lax.Precision.HIGHEST)
        return y + bias[None, :, None]

    q = lambda a: a.astype(jnp.bfloat16).astype(jnp.float32)
    fmap = []
    h = x
    for p in params["convs"]:
        y = conv(q(h), q(p["w"]), p["b"], p["stride"], p["pad"], p["groups"])
        y = jnp.where(y >= 0, y, LRELU_SLOPE * y)
        y = q(y)                            # kernel stores bf16 activations
        fmap.append(y)
        h = y
    p = params["conv_post"]
    y = conv(q(h), p["w"], p["b"], p["stride"], p["pad"], p["groups"])
    fmap.append(y)
    return y.reshape(y.shape[0], -1), fmap


if __name__ == "__main__":
    key = jax.random.PRNGKey(0)
    # Small synthetic config mirroring DiscriminatorSpec's structure:
    #   Conv1d(in, 32, 5, 1, pad=2) -> Conv1d(32, 64, 41, 4, groups=4, pad=20)
    #   -> Conv1d(64, 64, 5, 1, pad=2) -> conv_post Conv1d(64, 1, 3, 1, pad=1)
    B, T = 2, 32
    in_ch = 9   # stand-in for n_fft // 2 + 1
    layer_cfg = [
        dict(cin=in_ch, cout=32, k=5, stride=1, pad=2, groups=1),
        dict(cin=32,    cout=64, k=41, stride=4, pad=20, groups=4),
        dict(cin=64,    cout=64, k=5, stride=1, pad=2, groups=1),
    ]
    post_cfg = dict(cin=64, cout=1, k=3, stride=1, pad=1, groups=1)

    keys = jax.random.split(key, len(layer_cfg) + 2)
    params = {"convs": [], "conv_post": None}
    for cfg, k_ in zip(layer_cfg, keys[:len(layer_cfg)]):
        w, bias = _init_weight_norm_conv(k_, cfg["cout"],
                                         cfg["cin"] // cfg["groups"], cfg["k"])
        params["convs"].append(dict(w=w, b=bias, stride=cfg["stride"],
                                    pad=cfg["pad"], groups=cfg["groups"]))
    w, bias = _init_weight_norm_conv(keys[-2], post_cfg["cout"],
                                     post_cfg["cin"] // post_cfg["groups"],
                                     post_cfg["k"])
    params["conv_post"] = dict(w=w, b=bias, stride=post_cfg["stride"],
                               pad=post_cfg["pad"], groups=post_cfg["groups"])

    x = jax.random.normal(keys[-1], (B, in_ch, T), jnp.float32)

    ref_out, ref_fmap = _ref_forward(params, x)
    ref_out = jax.block_until_ready(ref_out)

    # Run with default caps (single-tile path) and with small forced caps so the
    # multi-(co, ci) tiled path -- needed for production channel counts on
    # v7x -- is also validated at toy size.
    for cog_cap, cin_cap in [(_COG_CAP, _CIN_CAP), (8, 8), (8, 512)]:
        out, fmap = discriminator_spec_forward(params, x,
                                               cog_cap=cog_cap, cin_cap=cin_cap)
        out = jax.block_until_ready(out)
        fmap = jax.block_until_ready(fmap)
        np.testing.assert_allclose(np.asarray(out.astype(jnp.float32)),
                                   np.asarray(ref_out), rtol=1e-2, atol=1e-2)
        for a, b_ in zip(fmap, ref_fmap):
            np.testing.assert_allclose(np.asarray(a.astype(jnp.float32)),
                                       np.asarray(b_), rtol=1e-2, atol=1e-2)
    print("KERNEL_OK")
</pallas_src>

<mosaic_0001>
module attributes {stable_mosaic.version = 11 : i64} {
  func.func @_conv1d_group_kernel(%arg0: i32, %arg1: i32, %arg2: i32, %arg3: i32, %arg4: i32, %arg5: memref<1x1x16x128xbf16, #tpu.memory_space<vmem>>, %arg6: memref<1x1x16x128xbf16, #tpu.memory_space<vmem>>, %arg7: memref<1x1x1x32x80xbf16, #tpu.memory_space<vmem>>, %arg8: memref<1x32x1xf32, #tpu.memory_space<vmem>>, %arg9: memref<1x32x128xbf16, #tpu.memory_space<vmem>>, %arg10: memref<1x16x256xbf16, #tpu.memory_space<vmem>>, %arg11: memref<80x128xbf16, #tpu.memory_space<vmem>>, %arg12: memref<32x128xf32, #tpu.memory_space<vmem>>) attributes {dimension_semantics = [#tpu.dimension_semantics<parallel>, #tpu.dimension_semantics<parallel>, #tpu.dimension_semantics<arbitrary>, #tpu.dimension_semantics<arbitrary>, #tpu.dimension_semantics<arbitrary>], iteration_bounds = array<i64: 2, 1, 1, 1, 1>, scalar_prefetch = 0 : i64, scratch_operands = 3 : i64, tpu.core_type = #tpu.core_type<tc>, window_params = [{transform_indices = @transform_0, window_bounds = array<i64: 1, 1, 16, 128>}, {transform_indices = @transform_1, window_bounds = array<i64: 1, 1, 16, 128>}, {transform_indices = @transform_2, window_bounds = array<i64: 1, 1, 1, 32, 80>}, {transform_indices = @transform_3, window_bounds = array<i64: 1, 32, 1>}, {transform_indices = @transform_4, window_bounds = array<i64: 1, 32, 128>}]} {
    %c0_i32 = arith.constant 0 : i32
    %0 = arith.cmpi eq, %arg3, %c0_i32 : i32
    %1 = arith.extui %0 : i1 to i32
    %c0_i32_0 = arith.constant 0 : i32
    %2 = arith.cmpi ne, %1, %c0_i32_0 : i32
    scf.if %2 {
      %c0_15 = arith.constant 0 : index
      %c0_16 = arith.constant 0 : index
      %c0_17 = arith.constant 0 : index
      %c0_18 = arith.constant 0 : index
      %20 = vector.load %arg5[%c0_15, %c0_16, %c0_17, %c0_18] : memref<1x1x16x128xbf16, #tpu.memory_space<vmem>>, vector<1x1x16x128xbf16>
      %21 = vector.shape_cast %20 : vector<1x1x16x128xbf16> to vector<1x16x128xbf16>
      %c0_19 = arith.constant 0 : index
      %c0_20 = arith.constant 0 : index
      %c0_21 = arith.constant 0 : index
      %22 = vector.load %arg10[%c0_19, %c0_20, %c0_21] : memref<1x16x256xbf16, #tpu.memory_space<vmem>>, vector<1x16x128xbf16>
      tpu.vector_store %arg10[%c0_19, %c0_20, %c0_21], %21 {strides = array<i32>} : memref<1x16x256xbf16, #tpu.memory_space<vmem>>, vector<1x16x128xbf16>,
      %c0_22 = arith.constant 0 : index
      %c0_23 = arith.constant 0 : index
      %c0_24 = arith.constant 0 : index
      %c0_25 = arith.constant 0 : index
      %23 = vector.load %arg6[%c0_22, %c0_23, %c0_24, %c0_25] : memref<1x1x16x128xbf16, #tpu.memory_space<vmem>>, vector<1x1x16x128xbf16>
      %24 = vector.shape_cast %23 : vector<1x1x16x128xbf16> to vector<1x16x128xbf16>
      %c0_26 = arith.constant 0 : index
      %c0_27 = arith.constant 0 : index
      %c128 = arith.constant 128 : index
      %25 = vector.load %arg10[%c0_26, %c0_27, %c128] : memref<1x16x256xbf16, #tpu.memory_space<vmem>>, vector<1x16x128xbf16>
      tpu.vector_store %arg10[%c0_26, %c0_27, %c128], %24 {strides = array<i32>} : memref<1x16x256xbf16, #tpu.memory_space<vmem>>, vector<1x16x128xbf16>,
      %c0_28 = arith.constant 0 : index
      %c0_29 = arith.constant 0 : index
      %c0_30 = arith.constant 0 : index
      %26 = vector.load %arg10[%c0_28, %c0_29, %c0_30] : memref<1x16x256xbf16, #tpu.memory_space<vmem>>, vector<1x16x128xbf16>
      %27 = vector.shape_cast %26 : vector<1x16x128xbf16> to vector<16x128xbf16>
      %c0_31 = arith.constant 0 : index
      %c0_32 = arith.constant 0 : index
      %28 = vector.load %arg11[%c0_31, %c0_32] : memref<80x128xbf16, #tpu.memory_space<vmem>>, vector<16x128xbf16>
      tpu.vector_store %arg11[%c0_31, %c0_32], %27 {strides = array<i32>} : memref<80x128xbf16, #tpu.memory_space<vmem>>, vector<16x128xbf16>,
      %c0_33 = arith.constant 0 : index
      %c0_34 = arith.constant 0 : index
      %c1 = arith.constant 1 : index
      %29 = vector.load %arg10[%c0_33, %c0_34, %c1] : memref<1x16x256xbf16, #tpu.memory_space<vmem>>, vector<1x16x128xbf16>
      %30 = vector.shape_cast %29 : vector<1x16x128xbf16> to vector<16x128xbf16>
      %c16 = arith.constant 16 : index
      %c0_35 = arith.constant 0 : index
      %31 = vector.load %arg11[%c16, %c0_35] : memref<80x128xbf16, #tpu.memory_space<vmem>>, vector<16x128xbf16>
      tpu.vector_store %arg11[%c16, %c0_35], %30 {strides = array<i32>} : memref<80x128xbf16, #tpu.memory_space<vmem>>, vector<16x128xbf16>,
      %c0_36 = arith.constant 0 : index
      %c0_37 = arith.constant 0 : index
      %c2 = arith.constant 2 : index
      %32 = vector.load %arg10[%c0_36, %c0_37, %c2] : memref<1x16x256xbf16, #tpu.memory_space<vmem>>, vector<1x16x128xbf16>
      %33 = vector.shape_cast %32 : vector<1x16x128xbf16> to vector<16x128xbf16>
      %c32 = arith.constant 32 : index
      %c0_38 = arith.constant 0 : index
      %34 = vector.load %arg11[%c32, %c0_38] : memref<80x128xbf16, #tpu.memory_space<vmem>>, vector<16x128xbf16>
      tpu.vector_store %arg11[%c32, %c0_38], %33 {strides = array<i32>} : memref<80x128xbf16, #tpu.memory_space<vmem>>, vector<16x128xbf16>,
      %c0_39 = arith.constant 0 : index
      %c0_40 = arith.constant 0 : index
      %c3 = arith.constant 3 : index
      %35 = vector.load %arg10[%c0_39, %c0_40, %c3] : memref<1x16x256xbf16, #tpu.memory_space<vmem>>, vector<1x16x128xbf16>
      %36 = vector.shape_cast %35 : vector<1x16x128xbf16> to vector<16x128xbf16>
      %c48 = arith.constant 48 : index
      %c0_41 = arith.constant 0 : index
      %37 = vector.load %arg11[%c48, %c0_41] : memref<80x128xbf16, #tpu.memory_space<vmem>>, vector<16x128xbf16>
      tpu.vector_store %arg11[%c48, %c0_41], %36 {strides = array<i32>} : memref<80x128xbf16, #tpu.memory_space<vmem>>, vector<16x128xbf16>,
      %c0_42 = arith.constant 0 : index
      %c0_43 = arith.constant 0 : index
      %c4 = arith.constant 4 : index
      %38 = vector.load %arg10[%c0_42, %c0_43, %c4] : memref<1x16x256xbf16, #tpu.memory_space<vmem>>, vector<1x16x128xbf16>
      %39 = vector.shape_cast %38 : vector<1x16x128xbf16> to vector<16x128xbf16>
      %c64 = arith.constant 64 : index
      %c0_44 = arith.constant 0 : index
      %40 = vector.load %arg11[%c64, %c0_44] : memref<80x128xbf16, #tpu.memory_space<vmem>>, vector<16x128xbf16>
      tpu.vector_store %arg11[%c64, %c0_44], %39 {strides = array<i32>} : memref<80x128xbf16, #tpu.memory_space<vmem>>, vector<16x128xbf16>,
    } else {
    }
    %c0 = arith.constant 0 : index
    %c0_1 = arith.constant 0 : index
    %c0_2 = arith.constant 0 : index
    %c0_3 = arith.constant 0 : index
    %c0_4 = arith.constant 0 : index
    %3 = vector.load %arg7[%c0, %c0_1, %c0_2, %c0_3, %c0_4] : memref<1x1x1x32x80xbf16, #tpu.memory_space<vmem>>, vector<1x1x1x32x80xbf16>
    %4 = vector.shape_cast %3 : vector<1x1x1x32x80xbf16> to vector<32x80xbf16>
    %c0_5 = arith.constant 0 : index
    %c0_6 = arith.constant 0 : index
    %5 = vector.load %arg11[%c0_5, %c0_6] : memref<80x128xbf16, #tpu.memory_space<vmem>>, vector<80x128xbf16>
    %cst = arith.constant dense<0.000000e+00> : vector<32x128xf32>
    %6 = tpu.matmul %4, %5, %cst {dimension_numbers = #tpu.dot_dimension_numbers<[1], [0], [0], [1], [0, 0, 1, 1], [], []>} : vector<32x80xbf16>, vector<80x128xbf16>, vector<32x128xf32> -> vector<32x128xf32>
    %c0_7 = arith.constant 0 : index
    %c0_8 = arith.constant 0 : index
    %c0_9 = arith.constant 0 : index
    %7 = vector.load %arg8[%c0_7, %c0_8, %c0_9] : memref<1x32x1xf32, #tpu.memory_space<vmem>>, vector<1x32x1xf32>
    %8 = vector.shape_cast %7 : vector<1x32x1xf32> to vector<32x1xf32>
    %9 = vector.broadcast %8 : vector<32x1xf32> to vector<32x128xf32>
    %10 = arith.addf %6, %9 : vector<32x128xf32>
    %cst_10 = arith.constant 0.000000e+00 : f32
    %11 = vector.broadcast %cst_10 : f32 to vector<32x128xf32>
    %12 = arith.cmpf oge, %10, %11 : vector<32x128xf32>
    %cst_11 = arith.constant 1.000000e-01 : f32
    %13 = vector.broadcast %cst_11 : f32 to vector<32x128xf32>
    %14 = arith.mulf %13, %10 : vector<32x128xf32>
    %15 = arith.select %12, %10, %14 : vector<32x128xi1>, vector<32x128xf32>
    %16 = arith.truncf %15 : vector<32x128xf32> to vector<32x128xbf16>
    %c0_12 = arith.constant 0 : index
    %c0_13 = arith.constant 0 : index
    %c0_14 = arith.constant 0 : index
    %17 = vector.load %arg9[%c0_12, %c0_13, %c0_14] : memref<1x32x128xbf16, #tpu.memory_space<vmem>>, vector<1x32x128xbf16>
    %18 = vector.shape_cast %17 : vector<1x32x128xbf16> to vector<32x128xbf16>
    %19 = vector.shape_cast %16 : vector<32x128xbf16> to vector<1x32x128xbf16>
    tpu.vector_store %arg9[%c0_12, %c0_13, %c0_14], %19 {strides = array<i32>} : memref<1x32x128xbf16, #tpu.memory_space<vmem>>, vector<1x32x128xbf16>,
    return
  }
  func.func @transform_0(%arg0: i32, %arg1: i32, %arg2: i32, %arg3: i32, %arg4: i32) -> (i32, i32, i32, i32) {
    %c1_i32 = arith.constant 1 : i32
    %0 = arith.muli %arg1, %c1_i32 : i32
    %1 = arith.addi %0, %arg4 : i32
    %c0_i32 = arith.constant 0 : i32
    %c0_i32_0 = arith.constant 0 : i32
    return %arg0, %c0_i32, %1, %arg2 : i32, i32, i32, i32
  }
  func.func @transform_1(%arg0: i32, %arg1: i32, %arg2: i32, %arg3: i32, %arg4: i32) -> (i32, i32, i32, i32) {
    %c1_i32 = arith.constant 1 : i32
    %0 = arith.muli %arg1, %c1_i32 : i32
    %1 = arith.addi %0, %arg4 : i32
    %c1_i32_0 = arith.constant 1 : i32
    %2 = arith.addi %arg2, %c1_i32_0 : i32
    %c1_i32_1 = arith.constant 1 : i32
    %3 = arith.muli %2, %c1_i32_1 : i32
    %c0_i32 = arith.constant 0 : i32
    %c0_i32_2 = arith.constant 0 : i32
    return %arg0, %c0_i32, %1, %3 : i32, i32, i32, i32
  }
  func.func @transform_2(%arg0: i32, %arg1: i32, %arg2: i32, %arg3: i32, %arg4: i32) -> (i32, i32, i32, i32, i32) {
    %c0_i32 = arith.constant 0 : i32
    %c0_i32_0 = arith.constant 0 : i32
    %c0_i32_1 = arith.constant 0 : i32
    return %arg1, %arg4, %arg3, %c0_i32, %c0_i32_0 : i32, i32, i32, i32, i32
  }
  func.func @transform_3(%arg0: i32, %arg1: i32, %arg2: i32, %arg3: i32, %arg4: i32) -> (i32, i32, i32) {
    %c1_i32 = arith.constant 1 : i32
    %0 = arith.muli %arg1, %c1_i32 : i32
    %1 = arith.addi %0, %arg3 : i32
    %c0_i32 = arith.constant 0 : i32
    %c0_i32_0 = arith.constant 0 : i32
    %c0_i32_1 = arith.constant 0 : i32
    return %1, %c0_i32, %c0_i32_0 : i32, i32, i32
  }
  func.func @transform_4(%arg0: i32, %arg1: i32, %arg2: i32, %arg3: i32, %arg4: i32) -> (i32, i32, i32) {
    %c1_i32 = arith.constant 1 : i32
    %0 = arith.muli %arg1, %c1_i32 : i32
    %1 = arith.addi %0, %arg3 : i32
    %c0_i32 = arith.constant 0 : i32
    return %arg0, %1, %arg2 : i32, i32, i32
  }
}

</mosaic_0001>

<llo_original>
// kernel: tpu_custom_call.1
$region0: #{tpu_custom_call.1}
  #allocation0 [shape = 'u32[]', space=smem, size = 0x4, offset = 0x4, fixed_abs, tag = 'smem constant byte address 0x4 - core index']
  #allocation1 [shape = 'u32[144,128]{1,0:T(1,128)}', space=vmem, size = 0x12000, scoped, tag = 'internal scratch']
  #allocation2 [shape = 'bf16[1,16,256]{2,1,0:T(16,128)(2,1)}', space=vmem, size = 0x2000, scoped, tag = 'scratch operand']
  #allocation3 [shape = 'bf16[80,128]{1,0:T(16,128)(2,1)}', space=vmem, size = 0x5000, scoped, tag = 'scratch operand']
  #allocation4 [shape = 'f32[32,128]{1,0:T(8,128)}', space=vmem, size = 0x4000, scoped, tag = 'scratch operand']
  %s0 = inlined_call_operand.vmem [shape: bf16[2,1,16,256], index: 0, kind: input, shape index: {}]
  %s1 = inlined_call_operand.hbm [shape: bf16[2,1,16,256], index: 1, kind: input, shape index: {}]
  %s2 = inlined_call_operand.hbm [shape: bf16[1,1,1,32,80], index: 2, kind: input, shape index: {}]
  %s3 = inlined_call_operand.vmem [shape: f32[1,32,1], index: 3, kind: input, shape index: {}]
  %s4 = inlined_call_operand.hbm [shape: bf16[2,32,128], index: 4, kind: output, shape index: {}]
  %s5 = sld [smem:[#allocation0]]
  $region102: #{tpu_custom_call.1} parent=0
    _
  %s7 = ssub.s32 1, %s5
  %s8 = scalar_select 0, %s7, %s5
  $region1: #{tpu_custom_call.1} parent=0
    #allocation5 [shape = 'u8[8192]{0}', space=vmem, size = 0x2000, scoped, tag = 'input window, operand 0']
    #allocation6 [shape = 'u8[8192]{0}', space=vmem, size = 0x2000, scoped, tag = 'input window, operand 1']
    #allocation7 [shape = 's32[2]{0}', space=sflag, size = 0x8, scoped, tag = 'scoped memory for tpu_custom_call.1']
    #allocation8 [shape = 's32[2]{0}', space=sflag, size = 0x8, scoped, tag = 'scoped memory for tpu_custom_call.1']
    #allocation9 [shape = 'u8[8192]{0}', space=vmem, size = 0x2000, scoped, tag = 'input window, operand 2, single buffered']
    #allocation10 [shape = 's32[1]{0}', space=sflag, size = 0x4, scoped, tag = 'scoped memory for tpu_custom_call.1']
    #allocation11 [shape = 'u8[16384]{0}', space=vmem, size = 0x4000, scoped, tag = 'output window, operand 0']
    %9 = vsyncpa [#allocation7], 0
    %s10 = scalar_lea.sflag [#allocation7], 1
    %11 = vsyncpa %s10, 0
    %12 = vsyncpa [#allocation10], 0
    %13 = vsyncpa [#allocation8], 0
    %s14 = scalar_lea.sflag [#allocation8], 1
    %15 = vsyncpa %s14, 0
    loop: start=0, step=1, limit=4
    $region2: #{tpu_custom_call.1} parent=1 // loop_pre_header
      _
    $region3: #{tpu_custom_call.1} parent=1 // loop_header
      %s17 = sphi 0, %s21
      %p18 = scmp.ge.s32.totalorder %s17, 4
      %s24 = sphi 0, %s57
      %s25 = sphi 0, %s53
      %s26 = sphi 0, %s49
      %s27 = sphi 0, %s45
      %s28 = sphi 0, %s41
      %s29 = sphi 0, %s24
      %s30 = sphi 0, %s25
      %s31 = sphi 0, %s26
      %s32 = sphi 0, %s27
      %s33 = sphi 0, %s28
      %s34 = sphi 0, %s29
      %s35 = sphi 0, %s30
      %s36 = sphi 0, %s31
      %s37 = sphi 0, %s32
      %s38 = sphi 0, %s33
      %s66 = sphi 0, %s68
      %s69 = sphi 0, %s66
      %s70 = sphi 0, %s69
      %s86 = sphi 0, %s70
      %s100 = sphi 0, %s102
      %s103 = sphi 0, %s100
      %s104 = sphi 0, %s103
      %s120 = sphi 0, %s104
      %s130 = sphi 0, %s132
      %s133 = sphi 0, %s130
      %s134 = sphi 0, %s133
      %s150 = sphi 0, %s134
      %s158 = sphi 0, %s160
      %s161 = sphi 0, %s158
      %s162 = sphi 0, %s161
      %s178 = sphi 0, %s162
      %s190 = sphi 0, %s192
      %s193 = sphi 0, %s190
      %s194 = sphi 0, %s193
      %s210 = sphi 0, %s194
    $region4: #{tpu_custom_call.1} parent=1 // loop_header_branch
      %20 = sbr.rel (%p18) target = $region8
    $region5: #{tpu_custom_call.1} parent=1 // loop_body
      %s22 = ssub.s32 %s17, 1
      %s23 = ssub.s32 %s17, 2
      %s39 = sadd.s32 1, %s28
      %p40 = scmp.ge.s32.totalorder %s39, 1
      %s41 = scalar_select %p40, 0, %s39
      %s42 = sadd.s32 1, %s27
      %s43 = scalar_select %p40, %s42, %s27
      %p44 = scmp.ge.s32.totalorder %s43, 1
      %s45 = scalar_select %p44, 0, %s43
      %s46 = sadd.s32 1, %s26
      %s47 = scalar_select %p44, %s46, %s26
      %p48 = scmp.ge.s32.totalorder %s47, 1
      %s49 = scalar_select %p48, 0, %s47
      %s50 = sadd.s32 1, %s25
      %s51 = scalar_select %p48, %s50, %s25
      %p52 = scmp.ge.s32.totalorder %s51, 1
      %s53 = scalar_select %p52, 0, %s51
      %s54 = sadd.s32 1, %s24
      %s55 = scalar_select %p52, %s54, %s24
      %p56 = scmp.ge.s32.totalorder %s55, 2
      %s57 = scalar_select %p56, 0, %s55
      %s58 = sadd.s32 %s25, %s28
      %s59 = sadd.s32 %s53, %s41
      %s60 = ssub.s32 %s24, %s57
      %s61 = ssub.s32 %s58, %s59
      %s62 = sor.u32 %s60, %s61
      %s63 = ssub.s32 %s26, %s49
      %s64 = sor.u32 %s62, %s63
      %p65 = scmp.eq.s32.totalorder %s64, 0
      %s67 = sadd.s32 %s66, 1
      %s68 = scalar_select %p65, %s66, %s67
      %p71 = pneg %p65
      %p72 = scmp.eq.s32.totalorder %s17, 1
      %p73 = por %p71, %p72
      %p74 = scmp.ne.s32.totalorder %s66, %s69
      %p75 = scmp.eq.s32.totalorder %s17, 0
      %p76 = por %p74, %p75
      %p77 = scmp.ne.s32.totalorder %s66, %s69
      %p78 = scmp.eq.s32.totalorder %s22, 1
      %p79 = por %p77, %p78
      %p80 = scmp.ne.s32.totalorder %s69, %s70
      %p81 = scmp.eq.s32.totalorder %s22, 0
      %p82 = por %p80, %p81
      %p83 = scmp.ne.s32.totalorder %s69, %s70
      %p84 = scmp.eq.s32.totalorder %s23, 1
      %p85 = por %p83, %p84
      %p87 = scmp.ne.s32.totalorder %s70, %s86
      %p88 = scmp.eq.s32.totalorder %s23, 0
      %p89 = por %p87, %p88
      %s90 = sadd.s32 %s25, %s28
      %s91 = sadd.s32 %s26, 1
      %s92 = sadd.s32 %s53, %s41
      %s93 = sadd.s32 %s49, 1
      %s94 = ssub.s32 %s24, %s57
      %s95 = ssub.s32 %s90, %s92
      %s96 = sor.u32 %s94, %s95
      %s97 = ssub.s32 %s91, %s93
      %s98 = sor.u32 %s96, %s97
      %p99 = scmp.eq.s32.totalorder %s98, 0
      %s101 = sadd.s32 %s100, 1
      %s102 = scalar_select %p99, %s100, %s101
      %p105 = pneg %p99
      %p106 = scmp.eq.s32.totalorder %s17, 1
      %p107 = por %p105, %p106
      %p108 = scmp.ne.s32.totalorder %s100, %s103
      %p109 = scmp.eq.s32.totalorder %s17, 0
      %p110 = por %p108, %p109
      %p111 = scmp.ne.s32.totalorder %s100, %s103
      %p112 = scmp.eq.s32.totalorder %s22, 1
      %p113 = por %p111, %p112
      %p114 = scmp.ne.s32.totalorder %s103, %s104
      %p115 = scmp.eq.s32.totalorder %s22, 0
      %p116 = por %p114, %p115
      %p117 = scmp.ne.s32.totalorder %s103, %s104
      %p118 = scmp.eq.s32.totalorder %s23, 1
      %p119 = por %p117, %p118
      %p121 = scmp.ne.s32.totalorder %s104, %s120
      %p122 = scmp.eq.s32.totalorder %s23, 0
      %p123 = por %p121, %p122
      %s124 = ssub.s32 %s25, %s53
      %s125 = ssub.s32 %s28, %s41
      %s126 = sor.u32 %s124, %s125
      %s127 = ssub.s32 %s27, %s45
      %s128 = sor.u32 %s126, %s127
      %p129 = scmp.eq.s32.totalorder %s128, 0
      %s131 = sadd.s32 %s130, 1
      %s132 = scalar_select %p129, %s130, %s131
      %p135 = pneg %p129
      %p136 = scmp.eq.s32.totalorder %s17, 1
      %p137 = por %p135, %p136
      %p138 = scmp.ne.s32.totalorder %s130, %s133
      %p139 = scmp.eq.s32.totalorder %s17, 0
      %p140 = por %p138, %p139
      %p141 = scmp.ne.s32.totalorder %s130, %s133
      %p142 = scmp.eq.s32.totalorder %s22, 1
      %p143 = por %p141, %p142
      %p144 = scmp.ne.s32.totalorder %s133, %s134
      %p145 = scmp.eq.s32.totalorder %s22, 0
      %p146 = por %p144, %p145
      %p147 = scmp.ne.s32.totalorder %s133, %s134
      %p148 = scmp.eq.s32.totalorder %s23, 1
      %p149 = por %p147, %p148
      %p151 = scmp.ne.s32.totalorder %s134, %s150
      %p152 = scmp.eq.s32.totalorder %s23, 0
      %p153 = por %p151, %p152
      %s154 = sadd.s32 %s25, %s27
      %s155 = sadd.s32 %s53, %s45
      %s156 = ssub.s32 %s154, %s155
      %p157 = scmp.eq.s32.totalorder %s156, 0
      %s159 = sadd.s32 %s158, 1
      %s160 = scalar_select %p157, %s158, %s159
      %p163 = pneg %p157
      %p164 = scmp.eq.s32.totalorder %s17, 1
      %p165 = por %p163, %p164
      %p166 = scmp.ne.s32.totalorder %s158, %s161
      %p167 = scmp.eq.s32.totalorder %s17, 0
      %p168 = por %p166, %p167
      %p169 = scmp.ne.s32.totalorder %s158, %s161
      %p170 = scmp.eq.s32.totalorder %s22, 1
      %p171 = por %p169, %p170
      %p172 = scmp.ne.s32.totalorder %s161, %s162
      %p173 = scmp.eq.s32.totalorder %s22, 0
      %p174 = por %p172, %p173
      %p175 = scmp.ne.s32.totalorder %s161, %s162
      %p176 = scmp.eq.s32.totalorder %s23, 1
      %p177 = por %p175, %p176
      %p179 = scmp.ne.s32.totalorder %s162, %s178
      %p180 = scmp.eq.s32.totalorder %s23, 0
      %p181 = por %p179, %p180
      %s182 = sadd.s32 %s25, %s27
      %s183 = sadd.s32 %s53, %s45
      %s184 = ssub.s32 %s24, %s57
      %s185 = ssub.s32 %s182, %s183
      %s186 = sor.u32 %s184, %s185
      %s187 = ssub.s32 %s26, %s49
      %s188 = sor.u32 %s186, %s187
      %p189 = scmp.eq.s32.totalorder %s188, 0
      %s191 = sadd.s32 %s190, 1
      %s192 = scalar_select %p189, %s190, %s191
      %p195 = pneg %p189
      %p196 = scmp.eq.s32.totalorder %s17, 1
      %p197 = por %p195, %p196
      %p198 = scmp.ne.s32.totalorder %s190, %s193
      %p199 = scmp.eq.s32.totalorder %s17, 0
      %p200 = por %p198, %p199
      %p201 = scmp.ne.s32.totalorder %s190, %s193
      %p202 = scmp.eq.s32.totalorder %s22, 1
      %p203 = por %p201, %p202
      %p204 = scmp.ne.s32.totalorder %s193, %s194
      %p205 = scmp.eq.s32.totalorder %s22, 0
      %p206 = por %p204, %p205
      %p207 = scmp.ne.s32.totalorder %s193, %s194
      %p208 = scmp.eq.s32.totalorder %s23, 1
      %p209 = por %p207, %p208
      %p211 = scmp.ne.s32.totalorder %s194, %s210
      %p212 = scmp.eq.s32.totalorder %s23, 0
      %p213 = por %p211, %p212
      %p214 = scmp.le.s32.totalorder 1, %s17
      %p215 = scmp.lt.s32.totalorder %s17, 3
      %p216 = pnand %p214, %p215
      %p217 = pneg %p216
      // Predicated region
      $region9: #{tpu_custom_call.1} parent=5 // pred_check
        _
      $region10: #{tpu_custom_call.1} parent=5 // pred_check_branch
        %219 = sbr.rel (%p216) target = $region12
      $region11: #{tpu_custom_call.1} parent=5 // pred_region
        %s220 = ssub.s32 %s17, 1
        // Predicated region
        $region13: #{tpu_custom_call.1} parent=11 // pred_check
          %p221 = pneg %p146
        $region14: #{tpu_custom_call.1} parent=11 // pred_check_branch
          %223 = sbr.rel (%p221) target = $region16
        $region15: #{tpu_custom_call.1} parent=11 // pred_region
          %s225 = ssub.s32 256, 256
          %226 = vsyncadd [#allocation10], %s225
          %s227 = smul.addr %s32, 4
          %s228 = smul.addr %s33, 4
          %s229 = sadd.s32 %s227, %s228
          %s230 = smul.addr %s30, 4
          %s231 = sadd.s32 %s229, %s230
          %s232 = smul.addr %s231, 64
          %s233 = scalar_lea.hbm %s2, %s232
          %s234 = sshll.u32 [#allocation9], 4
          %s235 = int_to_ptr.vmem [resolvable:$true] %s234
          %240 = dma.hbm_to_vmem [thread:$0]  %s233, 256, %s235, [#allocation10], 64, 64, 4
        $region16: #{tpu_custom_call.1} parent=11 // pred_fallthru
          _
        // Predicated region
        $region17: #{tpu_custom_call.1} parent=11 // pred_check
          %p241 = pneg %p174
        $region18: #{tpu_custom_call.1} parent=11 // pred_check_branch
          %243 = sbr.rel (%p241) target = $region20
        $region19: #{tpu_custom_call.1} parent=11 // pred_region
          %s244 = sadd.s32 %s30, %s32
          %p245 = scmp.lt.s32.totalorder %s244, 0
          %s246 = scalar_select %p245, %s244, 0
          %s247 = smul.addr %s246, 4
          %s248 = smul.addr %s247, 8
          %s249 = scalar_lea.vmem %s3, %s248
          %s250 = sadd.s32 %s30, %s32
        $region20: #{tpu_custom_call.1} parent=11 // pred_fallthru
          _
      $region12: #{tpu_custom_call.1} parent=5 // pred_fallthru
        _
      %p251 = scmp.lt.s32.totalorder %s17, 2
      // Predicated region
      $region21: #{tpu_custom_call.1} parent=5 // pred_check
        %p252 = pneg %p251
      $region22: #{tpu_custom_call.1} parent=5 // pred_check_branch
        %254 = sbr.rel (%p252) target = $region24
      $region23: #{tpu_custom_call.1} parent=5 // pred_region
        // Predicated region
        $region25: #{tpu_custom_call.1} parent=23 // pred_check
          %p255 = pneg %p76
        $region26: #{tpu_custom_call.1} parent=23 // pred_check_branch
          %257 = sbr.rel (%p255) target = $region28
        $region27: #{tpu_custom_call.1} parent=23 // pred_region
          %s258 = sand.u32 %s66, 1
          %s259 = sand.u32 %s66, 1
          %s260 = smul.addr %s259, 8
          %s261 = scalar_lea.vmem [#allocation5], %s260
          %s262 = sadd.s32 %s25, %s28
          %s263 = smul.u32 2, %s262
          %s264 = smul.addr %s263, 2
          %s265 = sadd.s32 %s26, %s264
          %s266 = smul.addr %s24, 4
          %s267 = sadd.s32 %s265, %s266
          %s268 = smul.addr %s267, 4
          %s269 = scalar_lea.vmem %s0, %s268
          // Predicated region
          $region29: #{tpu_custom_call.1} parent=27 // pred_check
            _
          $region30: #{tpu_custom_call.1} parent=27 // pred_check_branch
            %271 = sbr.rel (0) target = $region32
          $region31: #{tpu_custom_call.1} parent=27 // pred_region
            // Predicated region
            $region33: #{tpu_custom_call.1} parent=31 // pred_check
              _
            $region34: #{tpu_custom_call.1} parent=31 // pred_check_branch
              %273 = sbr.rel target = $region36
            $region35: #{tpu_custom_call.1} parent=31 // pred_region
              // Predicated region
              $region48: #{tpu_custom_call.1} parent=35 // pred_check
                _
              $region49: #{tpu_custom_call.1} parent=35 // pred_check_branch
                %290 = sbr.rel (0) target = $region51
              $region50: #{tpu_custom_call.1} parent=35 // pred_region
                loop: start=0, step=1, limit=1
                $region52: #{tpu_custom_call.1} parent=50 // loop_pre_header
                  _
                $region53: #{tpu_custom_call.1} parent=50 // loop_header
                  %s292 = sphi 0, %s296
                  %p293 = scmp.ge.s32.totalorder %s292, 1
                  %s297 = sphi %s269, %s269
                  %s298 = sphi %s261, %s261
                $region54: #{tpu_custom_call.1} parent=50 // loop_header_branch
                  %295 = sbr.rel (%p293) target = $region58
                $region55: #{tpu_custom_call.1} parent=50 // loop_body
                  _
                $region56: #{tpu_custom_call.1} parent=50 // loop_footer
                  %s296 = sadd.s32 1, %s292
                $region57: #{tpu_custom_call.1} parent=50 // loop_footer_branch
                  %291 = sbr.rel target = $region53
                $region58: #{tpu_custom_call.1} parent=50 // loop_exit
                  _
                loop: start=0, step=1, limit=1
                $region59: #{tpu_custom_call.1} parent=50 // loop_pre_header
                  _
                $region60: #{tpu_custom_call.1} parent=50 // loop_header
                  %s301 = sphi 0, %s305
                  %p302 = scmp.ge.s32.totalorder %s301, 1
                  %s306 = sphi %s269, %s269
                  %s307 = sphi %s261, %s261
                $region61: #{tpu_custom_call.1} parent=50 // loop_header_branch
                  %304 = sbr.rel (%p302) target = $region65
                $region62: #{tpu_custom_call.1} parent=50 // loop_body
                  %v308 = vld [vmem:[%s306] sm:$0xf]
                  %309 = vst [vmem:[%s307] sm:$0xf] %v308
                  %v310 = vld [vmem:[%s306 + $0x8] sm:$0xf]
                  %311 = vst [vmem:[%s307 + $0x4] sm:$0xf] %v310
                $region63: #{tpu_custom_call.1} parent=50 // loop_footer
                  %s305 = sadd.s32 1, %s301
                $region64: #{tpu_custom_call.1} parent=50 // loop_footer_branch
                  %300 = sbr.rel target = $region60
                $region65: #{tpu_custom_call.1} parent=50 // loop_exit
                  _
              $region51: #{tpu_custom_call.1} parent=35 // pred_fallthru
                _
            $region36: #{tpu_custom_call.1} parent=31 // pred_fallthru
              _
            // Predicated region
            $region37: #{tpu_custom_call.1} parent=31 // pred_check
              _
            $region38: #{tpu_custom_call.1} parent=31 // pred_check_branch
              %275 = sbr.rel (0) target = $region40
            $region39: #{tpu_custom_call.1} parent=31 // pred_region
              loop: start=0, step=1, limit=1
              $region41: #{tpu_custom_call.1} parent=39 // loop_pre_header
                _
              $region42: #{tpu_custom_call.1} parent=39 // loop_header
                %s278 = sphi 0, %s282
                %p279 = scmp.ge.s32.totalorder %s278, 1
                %s283 = sphi %s269, %s269
                %s284 = sphi %s261, %s261
              $region43: #{tpu_custom_call.1} parent=39 // loop_header_branch
                %281 = sbr.rel (%p279) target = $region47
              $region44: #{tpu_custom_call.1} parent=39 // loop_body
                %v285 = vld [vmem:[%s283] sm:$0xf]
                %286 = vst [vmem:[%s284] sm:$0xf] %v285
                %v287 = vld [vmem:[%s283 + $0x8] sm:$0xf]
                %288 = vst [vmem:[%s284 + $0x4] sm:$0xf] %v287
              $region45: #{tpu_custom_call.1} parent=39 // loop_footer
                %s282 = sadd.s32 1, %s278
              $region46: #{tpu_custom_call.1} parent=39 // loop_footer_branch
                %277 = sbr.rel target = $region42
              $region47: #{tpu_custom_call.1} parent=39 // loop_exit
                _
            $region40: #{tpu_custom_call.1} parent=31 // pred_fallthru
              _
          $region32: #{tpu_custom_call.1} parent=27 // pred_fallthru
            _
          %312 = vnop
        $region28: #{tpu_custom_call.1} parent=23 // pred_fallthru
          _
        // Predicated region
        $region66: #{tpu_custom_call.1} parent=23 // pred_check
          %p313 = pneg %p110
        $region67: #{tpu_custom_call.1} parent=23 // pred_check_branch
          %315 = sbr.rel (%p313) target = $region69
        $region68: #{tpu_custom_call.1} parent=23 // pred_region
          %s316 = sand.u32 %s100, 1
          %s317 = scalar_lea.sflag [#allocation7], %s316
          %s318 = sand.u32 %s100, 1
          %s319 = smul.addr %s318, 8
          %s320 = scalar_lea.vmem [#allocation6], %s319
          %s321 = sadd.s32 %s25, %s28
          %s322 = sadd.s32 %s26, 1
          %s323 = smul.u32 2, %s321
          %s325 = ssub.s32 128, 128
          %326 = vsyncadd %s317, %s325
          %s327 = smul.addr %s323, 2
          %s328 = sadd.s32 %s322, %s327
          %s329 = smul.addr %s24, 4
          %s330 = sadd.s32 %s328, %s329
          %s331 = smul.addr %s330, 64
          %s332 = scalar_lea.hbm %s1, %s331
          %s333 = sshll.u32 %s320, 4
          %s334 = int_to_ptr.vmem [resolvable:$true] %s333
          %339 = dma.hbm_to_vmem [thread:$0]  %s332, 128, %s334, %s317, 128, 64, 4
        $region69: #{tpu_custom_call.1} parent=23 // pred_fallthru
          _
      $region24: #{tpu_custom_call.1} parent=5 // pred_fallthru
        _
      %p340 = scmp.le.s32.totalorder 1, %s17
      %p341 = scmp.lt.s32.totalorder %s17, 3
      %p342 = pnand %p340, %p341
      %p343 = pneg %p342
      // Predicated region
      $region70: #{tpu_custom_call.1} parent=5 // pred_check
        _
      $region71: #{tpu_custom_call.1} parent=5 // pred_check_branch
        %345 = sbr.rel (%p342) target = $region73
      $region72: #{tpu_custom_call.1} parent=5 // pred_region
        %s346 = ssub.s32 %s17, 1
        %s347 = sand.u32 %s69, 1
        %s348 = sand.u32 %s69, 1
        %s349 = smul.addr %s348, 8
        %s350 = scalar_lea.vmem [#allocation5], %s349
        // Predicated region
        $region74: #{tpu_custom_call.1} parent=72 // pred_check
          %p351 = pneg %p82
        $region75: #{tpu_custom_call.1} parent=72 // pred_check_branch
          %353 = sbr.rel (%p351) target = $region77
        $region76: #{tpu_custom_call.1} parent=72 // pred_region
          _
        $region77: #{tpu_custom_call.1} parent=72 // pred_fallthru
          _
        %s354 = sand.u32 %s103, 1
        %s355 = scalar_lea.sflag [#allocation7], %s354
        %s356 = sand.u32 %s103, 1
        %s357 = smul.addr %s356, 8
        %s358 = scalar_lea.vmem [#allocation6], %s357
        // Predicated region
        $region78: #{tpu_custom_call.1} parent=72 // pred_check
          %p359 = pneg %p116
        $region79: #{tpu_custom_call.1} parent=72 // pred_check_branch
          %361 = sbr.rel (%p359) target = $region81
        $region80: #{tpu_custom_call.1} parent=72 // pred_region
          %362 = dma.done %s355, 128
        $region81: #{tpu_custom_call.1} parent=72 // pred_fallthru
          _
        // Predicated region
        $region82: #{tpu_custom_call.1} parent=72 // pred_check
          %p363 = pneg %p146
        $region83: #{tpu_custom_call.1} parent=72 // pred_check_branch
          %365 = sbr.rel (%p363) target = $region85
        $region84: #{tpu_custom_call.1} parent=72 // pred_region
          %366 = dma.done [#allocation10], 256
        $region85: #{tpu_custom_call.1} parent=72 // pred_fallthru
          _
        %s367 = sand.u32 %s69, 1
        %s368 = sand.u32 %s69, 1
        %s369 = smul.addr %s368, 8
        %s370 = scalar_lea.vmem [#allocation5], %s369
        %p371 = pneg %p82
        %p372 = pneg %p79
        %s373 = sand.u32 %s103, 1
        %s374 = scalar_lea.sflag [#allocation7], %s373
        %s375 = sand.u32 %s103, 1
        %s376 = smul.addr %s375, 8
        %s377 = scalar_lea.vmem [#allocation6], %s376
        %p378 = pneg %p116
        %p379 = pneg %p113
        %p380 = pneg %p146
        %p381 = pneg %p143
        %s382 = sadd.s32 %s30, %s32
        %p383 = scmp.lt.s32.totalorder %s382, 0
        %s384 = scalar_select %p383, %s382, 0
        %s385 = smul.addr %s384, 4
        %s386 = smul.addr %s385, 8
        %s387 = scalar_lea.vmem %s3, %s386
        %p388 = pneg %p174
        %p389 = pneg %p171
        %p390 = pneg %p206
        %p391 = pneg %p203
        %s392 = sand.u32 %s193, 1
        %s393 = scalar_lea.sflag [#allocation8], %s392
        %s394 = sand.u32 %s193, 1
        %s395 = smul.addr %s394, 16
        %s396 = scalar_lea.vmem [#allocation11], %s395
        %s397 = sadd.s32 %s30, %s33
        %s398 = smul.u32 2, %s397
        %s399 = sadd.s32 %s30, %s33
        %s400 = sadd.s32 %s31, 1
        %s401 = smul.u32 2, %s399
        %s402 = sadd.s32 %s30, %s32
        %p403 = scmp.lt.s32.totalorder %s402, 0
        %s404 = scalar_select %p403, %s402, 0
        %s405 = smul.addr %s404, 4
        %s406 = smul.addr %s405, 8
        %s407 = scalar_lea.vmem %s3, %s406
        %s408 = sadd.s32 %s30, %s32
        %s409 = sadd.s32 %s30, %s32
        %s410 = smul.u32 4, %s409
        %p412 = scmp.eq.s32.totalorder %s32, 0
        // Predicated region
        $region86: #{tpu_custom_call.1} parent=72 // pred_check
          %p413 = pneg %p412
        $region87: #{tpu_custom_call.1} parent=72 // pred_check_branch
          %415 = sbr.rel (%p413) target = $region89
        $region88: #{tpu_custom_call.1} parent=72 // pred_region
          %v416 = vld [vmem:[%s350] sm:$0xf]
          %v417 = vld [vmem:[%s350 + $0x4] sm:$0xf]
          %v420 = vunpack.c.l.b16 %v416
          %v421 = vunpack.c.l.b16 %v417
          %v422 = vpack.c.b16 %v421, %v420
          %424 = vst [vmem:[#allocation2] sm:$0xff] %v422
          %v425 = vld [vmem:[%s358] sm:$0xf]
          %v426 = vld [vmem:[%s358 + $0x4] sm:$0xf]
          %v429 = vunpack.c.l.b16 %v425
          %v430 = vunpack.c.l.b16 %v426
          %v431 = vpack.c.b16 %v430, %v429
          %433 = vst [vmem:[#allocation2 + $0x8] sm:$0xff] %v431
          %v434 = vld [vmem:[#allocation2] sm:$0xff]
          %435 = vst [vmem:[#allocation3] sm:$0xff] %v434
          %v436 = vld [vmem:[#allocation2] sm:$0xff]
          %v437 = vld [vmem:[#allocation2 + $0x8] sm:$0xff]
          %440 = vrot.lane.b32.xlu0 %v436, 127
          %v441 = vpop.permute.xlu0 %440
          %442 = vrot.lane.b32.xlu0 %v437, 127
          %v443 = vpop.permute.xlu0 %442
          %vm444 = vcmask 1039360
          %v445 = vsel %vm444, %v441, %v443
          %447 = vst [vmem:[#allocation3 + $0x8] sm:$0xff] %v445
          %v448 = vld [vmem:[#allocation2] sm:$0xff]
          %v449 = vld [vmem:[#allocation2 + $0x8] sm:$0xff]
          %452 = vrot.lane.b32.xlu0 %v448, 126
          %v453 = vpop.permute.xlu0 %452
          %454 = vrot.lane.b32.xlu0 %v449, 126
          %v455 = vpop.permute.xlu0 %454
          %vm456 = vcmask 1031168
          %v457 = vsel %vm456, %v453, %v455
          %459 = vst [vmem:[#allocation3 + $0x10] sm:$0xff] %v457
          %v460 = vld [vmem:[#allocation2] sm:$0xff]
          %v461 = vld [vmem:[#allocation2 + $0x8] sm:$0xff]
          %464 = vrot.lane.b32.xlu0 %v460, 125
          %v465 = vpop.permute.xlu0 %464
          %466 = vrot.lane.b32.xlu0 %v461, 125
          %v467 = vpop.permute.xlu0 %466
          %vm468 = vcmask 1022976
          %v469 = vsel %vm468, %v465, %v467
          %471 = vst [vmem:[#allocation3 + $0x18] sm:$0xff] %v469
          %v472 = vld [vmem:[#allocation2] sm:$0xff]
          %v473 = vld [vmem:[#allocation2 + $0x8] sm:$0xff]
          %476 = vrot.lane.b32.xlu0 %v472, 124
          %v477 = vpop.permute.xlu0 %476
          %478 = vrot.lane.b32.xlu0 %v473, 124
          %v479 = vpop.permute.xlu0 %478
          %vm480 = vcmask 1014784
          %v481 = vsel %vm480, %v477, %v479
          %483 = vst [vmem:[#allocation3 + $0x20] sm:$0xff] %v481
        $region89: #{tpu_custom_call.1} parent=72 // pred_fallthru
          _
        %v484 = vld [vmem:[#allocation9] sm:$0xf]
        %v485 = vld [vmem:[#allocation9 + $0x4] sm:$0xf]
        %v486 = vld [vmem:[#allocation9 + $0x8] sm:$0xf]
        %v487 = vld [vmem:[#allocation9 + $0xc] sm:$0xf]
        %v488 = vld [vmem:[#allocation3] sm:$0xff]
        %v489 = vld [vmem:[#allocation3 + $0x8] sm:$0xff]
        %v490 = vld [vmem:[#allocation3 + $0x10] sm:$0xff]
        %v491 = vld [vmem:[#allocation3 + $0x18] sm:$0xff]
        %v492 = vld [vmem:[#allocation3 + $0x20] sm:$0xff]
        %v493 = vld [vmem:[%s407] sm:$0xff]
        %v494 = vld [vmem:[%s407 + $0x8] sm:$0xff]
        %v495 = vld [vmem:[%s407 + $0x10] sm:$0xff]
        %v496 = vld [vmem:[%s407 + $0x18] sm:$0xff]
        %498 = vset.pattern.permute.xlu0 0
        %499 = vperm.xlu0 %498, %v493
        %v500 = vpop.permute.xlu0 %499
        %503 = vset.pattern.permute.xlu0 0
        %504 = vperm.xlu0 %503, %v494
        %v505 = vpop.permute.xlu0 %504
        %508 = vset.pattern.permute.xlu0 0
        %509 = vperm.xlu0 %508, %v495
        %v510 = vpop.permute.xlu0 %509
        %513 = vset.pattern.permute.xlu0 0
        %514 = vperm.xlu0 %513, %v496
        %v515 = vpop.permute.xlu0 %514
        %v521 = vunpack.c.l.b16 %v484
        %v522 = vunpack.c.l.b16 %v485
        %v523 = vunpack.c.l.b16 %v486
        %v524 = vunpack.c.l.b16 %v487
        %v525 = vpack.c.b16 %v522, %v521
        %v526 = vpack.c.b16 %v524, %v523
        %vm527 = vcmask 654336
        %v529 = vsel %vm527, %v525, 0
        %v532 = vsel %vm527, %v526, 0
        %534 = vmatprep.subr.bf16.mxu0 0
        %535 = vmatpush1.bf16.msra.mxu0 %v488
        %536 = vmatprep.subr.bf16.mxu0 0
        %537 = vmatpush1.bf16.msra.mxu0 %v489
        %538 = vmatprep.subr.bf16.mxu0 0
        %539 = vmatpush1.bf16.msra.mxu0 %v490
        %540 = vmatprep.subr.bf16.mxu0 0
        %541 = vmatpush1.bf16.msra.mxu0 %v491
        %542 = vmatprep.subr.bf16.mxu0 0
        %543 = vmatpush1.bf16.msra.mxu0 %v492
        %544 = vmatprep.subr.bf16.mxu0 0
        %545 = vmatpush1.bf16.msra.mxu0 0
        %546 = vmatprep.subr.bf16.mxu0 0
        %547 = vmatpush1.bf16.msra.mxu0 0
        %548 = vmatprep.subr.bf16.mxu0 0
        %549 = vmatpush1.bf16.msra.mxu0 0
        %550 = vmatprep.subr.bf16.mxu0 0
        %551 = vmatpush1.bf16.msra.mxu0 0
        %552 = vmatprep.subr.bf16.mxu0 0
        %553 = vmatpush1.bf16.msra.mxu0 0
        %554 = vmatprep.subr.bf16.mxu0 0
        %555 = vmatpush1.bf16.msra.mxu0 0
        %556 = vmatprep.subr.bf16.mxu0 0
        %557 = vmatpush1.bf16.msra.mxu0 0
        %558 = vmatprep.subr.bf16.mxu0 0
        %559 = vmatpush1.bf16.msra.mxu0 0
        %560 = vmatprep.subr.bf16.mxu0 0
        %561 = vmatpush1.bf16.msra.mxu0 0
        %562 = vmatprep.subr.bf16.mxu0 0
        %563 = vmatpush1.bf16.msra.mxu0 0
        %564 = vmatprep.subr.bf16.mxu0 0
        %565 = vmatpush1.bf16.msra.mxu0 0
        %566 = vmatprep.mubr.bf16.mxu0 0
        %567 = vmatmul.mubr.bf16.gmra.mrb[0].mxu0 %v529
        %v568 = vpop.f32.mrb[0].mxu0
        %v569 = vadd.f32 %v500, %v568
        %v570 = vpop.f32.mrb[0].mxu0
        %v571 = vpop.f32.mrb[0].mxu0
        %v572 = vadd.f32 %v505, %v571
        %v573 = vpop.f32.mrb[0].mxu0
        %574 = vmatprep.mubr.bf16.mxu0 0
        %575 = vmatmul.mubr.bf16.gmra.mrb[0].mxu0 %v532
        %v576 = vpop.f32.mrb[0].mxu0
        %v577 = vadd.f32 %v510, %v576
        %v578 = vpop.f32.mrb[0].mxu0
        %v579 = vpop.f32.mrb[0].mxu0
        %v580 = vadd.f32 %v515, %v579
        %v581 = vpop.f32.mrb[0].mxu0
        %582 = vdwg.mxu0
        %vm583 = vcmp.ge.f32.partialorder %v569, 0.0
        %vm584 = vcmp.ge.f32.partialorder %v572, 0.0
        %vm585 = vcmp.ge.f32.partialorder %v577, 0.0
        %vm586 = vcmp.ge.f32.partialorder %v580, 0.0
        %v587 = vmul.f32 %v569, 0.1
        %v588 = vmul.f32 %v572, 0.1
        %v589 = vmul.f32 %v577, 0.1
        %v590 = vmul.f32 %v580, 0.1
        %v591 = vsel %vm583, %v569, %v587
        %v592 = vsel %vm584, %v572, %v588
        %v593 = vsel %vm585, %v577, %v589
        %v594 = vsel %vm586, %v580, %v590
        %v595 = vpack.c.bf16 %v592, %v591
        %v596 = vpack.c.bf16 %v594, %v593
        %v599 = vunpack.c.l.b16 %v595
        %v600 = vunpack.c.h.b16 %v595
        %v601 = vunpack.c.l.b16 %v596
        %v602 = vunpack.c.h.b16 %v596
        %v603 = vpack.c.b16 %v599, %v599
        %v604 = vpack.c.b16 %v600, %v600
        %v605 = vpack.c.b16 %v601, %v601
        %v606 = vpack.c.b16 %v602, %v602
        %611 = vst [vmem:[%s396] sm:$0xf] %v603
        %612 = vst [vmem:[%s396 + $0x4] sm:$0xf] %v604
        %613 = vst [vmem:[%s396 + $0x8] sm:$0xf] %v605
        %614 = vst [vmem:[%s396 + $0xc] sm:$0xf] %v606
        %s615 = sand.u32 %s193, 1
        %s616 = scalar_lea.sflag [#allocation8], %s615
        %s617 = sand.u32 %s193, 1
        %s618 = smul.addr %s617, 16
        %s619 = scalar_lea.vmem [#allocation11], %s618
        // Predicated region
        $region90: #{tpu_custom_call.1} parent=72 // pred_check
          %p620 = pneg %p203
        $region91: #{tpu_custom_call.1} parent=72 // pred_check_branch
          %622 = sbr.rel (%p620) target = $region93
        $region92: #{tpu_custom_call.1} parent=72 // pred_region
          %s623 = sadd.s32 %s30, %s32
          %s624 = smul.u32 4, %s623
          %s626 = ssub.s32 256, 256
          %627 = vsyncadd %s616, %s626
          %s628 = sadd.s32 %s31, %s624
          %s629 = smul.addr %s29, 4
          %s630 = sadd.s32 %s628, %s629
          %s631 = smul.addr %s630, 64
          %s632 = scalar_lea.hbm %s4, %s631
          %s633 = sshll.u32 %s619, 4
          %s634 = int_to_ptr.vmem [resolvable:$true] %s633
          %639 = dma.vmem_to_hbm [thread:$0]  %s634, 256, %s632, %s616, 64, 64, 4
        $region93: #{tpu_custom_call.1} parent=72 // pred_fallthru
          _
      $region73: #{tpu_custom_call.1} parent=5 // pred_fallthru
        _
      %p640 = scmp.le.s32.totalorder 2, %s17
      // Predicated region
      $region94: #{tpu_custom_call.1} parent=5 // pred_check
        %p641 = pneg %p640
      $region95: #{tpu_custom_call.1} parent=5 // pred_check_branch
        %643 = sbr.rel (%p641) target = $region97
      $region96: #{tpu_custom_call.1} parent=5 // pred_region
        %s644 = ssub.s32 %s17, 2
        // Predicated region
        $region98: #{tpu_custom_call.1} parent=96 // pred_check
          %p645 = pneg %p209
        $region99: #{tpu_custom_call.1} parent=96 // pred_check_branch
          %647 = sbr.rel (%p645) target = $region101
        $region100: #{tpu_custom_call.1} parent=96 // pred_region
          %s648 = sand.u32 %s194, 1
          %s649 = scalar_lea.sflag [#allocation8], %s648
          %s650 = sand.u32 %s194, 1
          %s651 = smul.addr %s650, 16
          %s652 = scalar_lea.vmem [#allocation11], %s651
          %653 = dma.done %s649, 256
        $region101: #{tpu_custom_call.1} parent=96 // pred_fallthru
          _
      $region97: #{tpu_custom_call.1} parent=5 // pred_fallthru
        _
    $region6: #{tpu_custom_call.1} parent=1 // loop_footer
      %s21 = sadd.s32 1, %s17
    $region7: #{tpu_custom_call.1} parent=1 // loop_footer_branch
      %16 = sbr.rel target = $region3
    $region8: #{tpu_custom_call.1} parent=1 // loop_exit
      _
    %654 = vsyncpa [#allocation7], 1
    %s655 = scalar_lea.sflag [#allocation7], 1
    %656 = vsyncpa %s655, 1
    %657 = vsyncpa [#allocation10], 1
    %658 = vsyncpa [#allocation8], 1
    %s659 = scalar_lea.sflag [#allocation8], 1
    %660 = vsyncpa %s659, 1

</llo_original>
